<compile_context>
chip_gen: v6e
topology: v6e:2x2x1
jax: 0.10.0
libtpu: 0.0.40
codegen_flags: <defaults>
</compile_context>

<pallas_src>
import jax
import jax.numpy as jnp
import numpy as np
from jax.experimental import pallas as pl
from jax.experimental.pallas import tpu as pltpu

LANE_PAD = 128  # lane-dense output width for the 1-wide scoring head


def late_fusion_kernel(x_ref, we_ref, be_ref,
                       w1_ref, b1_ref,
                       w2_ref, b2_ref,
                       wo_ref, bo_ref,
                       out_ref):
    # Frame-mean pooling in f32 (exact commute with the linear embedder).
    # x_ref: (B, F, Din) f32 -> pooled (B, Din) f32.
    pooled = jnp.mean(x_ref[...], axis=1)

    # Pooled-frame embedding: bf16 MXU operands, f32 accumulate + bias.
    emb = jnp.dot(pooled.astype(jnp.bfloat16), we_ref[...],
                  preferred_element_type=jnp.float32) + be_ref[...]

    # ReLU MLP: MXU operands in bf16, bias/ReLU in f32.
    h = jnp.maximum(
        jnp.dot(emb.astype(jnp.bfloat16), w1_ref[...],
                preferred_element_type=jnp.float32) + b1_ref[...], 0.0)
    h = jnp.maximum(
        jnp.dot(h.astype(jnp.bfloat16), w2_ref[...],
                preferred_element_type=jnp.float32) + b2_ref[...], 0.0)

    # Lane-dense (B, 128) score slab; the real score lives in column 0.
    out_ref[...] = (jnp.dot(h, wo_ref[...],
                            preferred_element_type=jnp.float32)
                    + bo_ref[...]).astype(out_ref.dtype)


def prepare_params(params):
    """One-time, host-side param prep: bf16 matmul weights + lane-padded head."""
    we, be, w1, b1, w2, b2, wo, bo = params
    h2 = wo.shape[0]
    wo_pad = jnp.zeros((h2, LANE_PAD), jnp.float32).at[:, :1].set(wo)
    bo_pad = jnp.zeros((1, LANE_PAD), jnp.float32).at[:, :1].set(bo)
    return (we.astype(jnp.bfloat16), be,
            w1.astype(jnp.bfloat16), b1,
            w2.astype(jnp.bfloat16), b2,
            wo_pad, bo_pad)


def late_fusion(x, prepared_params, num_frames):
    """x: (B, F, C, H, W) float32.  Returns (B, 1) score."""
    B, F, C, H, W = x.shape
    assert F == num_frames
    Din = C * H * W
    we, be, w1, b1, w2, b2, wo_pad, bo_pad = prepared_params
    E, H1, H2 = we.shape[1], w1.shape[1], w2.shape[1]

    # Only a layout-flatten (no compute) happens in the wrapper; pooling and
    # the whole MLP run inside the kernel.
    x_flat = x.reshape(B, F, Din)

    args = (x_flat, we, be, w1, b1, w2, b2, wo_pad, bo_pad)
    flops = (B * F * Din                                   # frame-mean adds
             + 2 * B * (Din * E + E * H1 + H1 * H2 + H2 * LANE_PAD))
    bytes_accessed = (sum(int(a.size) * a.dtype.itemsize for a in args)
                      + B * LANE_PAD * 4)

    out = pl.pallas_call(
        late_fusion_kernel,
        out_shape=jax.ShapeDtypeStruct((B, LANE_PAD), jnp.float32),
        in_specs=[pl.BlockSpec(memory_space=pltpu.MemorySpace.VMEM)
                  for _ in args],
        out_specs=pl.BlockSpec(memory_space=pltpu.MemorySpace.VMEM),
        compiler_params=pltpu.CompilerParams(
            vmem_limit_bytes=32 * 1024 * 1024),
        cost_estimate=pl.CostEstimate(flops=flops, transcendentals=0,
                                      bytes_accessed=bytes_accessed),
    )(*args)
    return out[:, :1]


def make_params(key, embedding_size, hidden_sizes, d_in):
    ks = jax.random.split(key, 8)
    h1, h2 = hidden_sizes

    def lin(k, fan_in, fan_out):
        kw, kb = jax.random.split(k)
        bound = 1.0 / np.sqrt(fan_in)
        w = jax.random.uniform(kw, (fan_in, fan_out), jnp.float32, -bound, bound)
        b = jax.random.uniform(kb, (1, fan_out), jnp.float32, -bound, bound)
        return w, b

    we, be = lin(ks[0], d_in, embedding_size)   # synthetic "pretrained" embedder
    w1, b1 = lin(ks[1], embedding_size, h1)     # fc_layers[0]
    w2, b2 = lin(ks[2], h1, h2)                 # fc_layers[1]
    wo, bo = lin(ks[3], h2, 1)                  # fc_layers[-1] -> scalar score
    return (we, be, w1, b1, w2, b2, wo, bo)


def late_fusion_ref(x, params, num_frames):
    """Pure-JAX f32 reference mirroring the PyTorch forward (per-frame embed,
    mean over frames, ReLU MLP, scalar head)."""
    we, be, w1, b1, w2, b2, wo, bo = params
    B, F, C, H, W = x.shape
    feats = x.reshape(B, F, C * H * W) @ we + be   # per-frame embeddings
    pooled = feats.mean(axis=1)                    # mean over frames
    h = jnp.maximum(pooled @ w1 + b1, 0.0)
    h = jnp.maximum(h @ w2 + b2, 0.0)
    return h @ wo + bo


if __name__ == "__main__":
    key = jax.random.PRNGKey(0)
    k_x, k_p = jax.random.split(key)

    # small shapes consistent with the module
    B, num_frames, C, H, W = 2, 8, 4, 16, 16
    embedding_size = 32
    hidden_sizes = [64, 32]
    d_in = C * H * W

    x = jax.random.normal(k_x, (B, num_frames, C, H, W), dtype=jnp.float32)
    params = make_params(k_p, embedding_size, hidden_sizes, d_in)
    prepared = prepare_params(params)

    out = jax.block_until_ready(late_fusion(x, prepared, num_frames))
    ref = jax.block_until_ready(late_fusion_ref(x, params, num_frames))

    # tolerance reflects bf16 MXU operands (all accumulation stays f32)
    np.testing.assert_allclose(np.asarray(out), np.asarray(ref),
                               rtol=2e-2, atol=2e-2)
    print("KERNEL_OK")
</pallas_src>

<mosaic_0001>
module attributes {stable_mosaic.version = 11 : i64} {
  func.func @late_fusion_kernel(%arg0: memref<2x8x1024xf32, #tpu.memory_space<vmem>>, %arg1: memref<1024x32xbf16, #tpu.memory_space<vmem>>, %arg2: memref<1x32xf32, #tpu.memory_space<vmem>>, %arg3: memref<32x64xbf16, #tpu.memory_space<vmem>>, %arg4: memref<1x64xf32, #tpu.memory_space<vmem>>, %arg5: memref<64x32xbf16, #tpu.memory_space<vmem>>, %arg6: memref<1x32xf32, #tpu.memory_space<vmem>>, %arg7: memref<32x128xf32, #tpu.memory_space<vmem>>, %arg8: memref<1x128xf32, #tpu.memory_space<vmem>>, %arg9: memref<2x128xf32, #tpu.memory_space<vmem>>) attributes {dimension_semantics = [], scalar_prefetch = 0 : i64, scratch_operands = 0 : i64, tpu.core_type = #tpu.core_type<tc>} {
    %c0 = arith.constant 0 : index
    %c0_0 = arith.constant 0 : index
    %c0_1 = arith.constant 0 : index
    %0 = vector.load %arg0[%c0, %c0_0, %c0_1] : memref<2x8x1024xf32, #tpu.memory_space<vmem>>, vector<2x8x1024xf32>
    %cst = arith.constant dense<0.000000e+00> : vector<2x1024xf32>
    %1 = vector.multi_reduction <add>, %0, %cst [1] : vector<2x8x1024xf32> to vector<2x1024xf32>
    %cst_2 = arith.constant 8.000000e+00 : f32
    %2 = vector.broadcast %cst_2 : f32 to vector<2x1024xf32>
    %3 = arith.divf %1, %2 : vector<2x1024xf32>
    %4 = arith.truncf %3 : vector<2x1024xf32> to vector<2x1024xbf16>
    %c0_3 = arith.constant 0 : index
    %c0_4 = arith.constant 0 : index
    %5 = vector.load %arg1[%c0_3, %c0_4] : memref<1024x32xbf16, #tpu.memory_space<vmem>>, vector<1024x32xbf16>
    %cst_5 = arith.constant dense<0.000000e+00> : vector<2x32xf32>
    %6 = tpu.matmul %4, %5, %cst_5 {dimension_numbers = #tpu.dot_dimension_numbers<[1], [0], [0], [1], [0, 0, 1, 1], [], []>} : vector<2x1024xbf16>, vector<1024x32xbf16>, vector<2x32xf32> -> vector<2x32xf32>
    %c0_6 = arith.constant 0 : index
    %c0_7 = arith.constant 0 : index
    %7 = vector.load %arg2[%c0_6, %c0_7] : memref<1x32xf32, #tpu.memory_space<vmem>>, vector<1x32xf32>
    %8 = vector.broadcast %7 : vector<1x32xf32> to vector<2x32xf32>
    %9 = arith.addf %6, %8 : vector<2x32xf32>
    %10 = arith.truncf %9 : vector<2x32xf32> to vector<2x32xbf16>
    %c0_8 = arith.constant 0 : index
    %c0_9 = arith.constant 0 : index
    %11 = vector.load %arg3[%c0_8, %c0_9] : memref<32x64xbf16, #tpu.memory_space<vmem>>, vector<32x64xbf16>
    %cst_10 = arith.constant dense<0.000000e+00> : vector<2x64xf32>
    %12 = tpu.matmul %10, %11, %cst_10 {dimension_numbers = #tpu.dot_dimension_numbers<[1], [0], [0], [1], [0, 0, 1, 1], [], []>} : vector<2x32xbf16>, vector<32x64xbf16>, vector<2x64xf32> -> vector<2x64xf32>
    %c0_11 = arith.constant 0 : index
    %c0_12 = arith.constant 0 : index
    %13 = vector.load %arg4[%c0_11, %c0_12] : memref<1x64xf32, #tpu.memory_space<vmem>>, vector<1x64xf32>
    %14 = vector.broadcast %13 : vector<1x64xf32> to vector<2x64xf32>
    %15 = arith.addf %12, %14 : vector<2x64xf32>
    %cst_13 = arith.constant 0.000000e+00 : f32
    %16 = vector.broadcast %cst_13 : f32 to vector<2x64xf32>
    %17 = arith.maximumf %15, %16 : vector<2x64xf32>
    %18 = arith.truncf %17 : vector<2x64xf32> to vector<2x64xbf16>
    %c0_14 = arith.constant 0 : index
    %c0_15 = arith.constant 0 : index
    %19 = vector.load %arg5[%c0_14, %c0_15] : memref<64x32xbf16, #tpu.memory_space<vmem>>, vector<64x32xbf16>
    %cst_16 = arith.constant dense<0.000000e+00> : vector<2x32xf32>
    %20 = tpu.matmul %18, %19, %cst_16 {dimension_numbers = #tpu.dot_dimension_numbers<[1], [0], [0], [1], [0, 0, 1, 1], [], []>} : vector<2x64xbf16>, vector<64x32xbf16>, vector<2x32xf32> -> vector<2x32xf32>
    %c0_17 = arith.constant 0 : index
    %c0_18 = arith.constant 0 : index
    %21 = vector.load %arg6[%c0_17, %c0_18] : memref<1x32xf32, #tpu.memory_space<vmem>>, vector<1x32xf32>
    %22 = vector.broadcast %21 : vector<1x32xf32> to vector<2x32xf32>
    %23 = arith.addf %20, %22 : vector<2x32xf32>
    %cst_19 = arith.constant 0.000000e+00 : f32
    %24 = vector.broadcast %cst_19 : f32 to vector<2x32xf32>
    %25 = arith.maximumf %23, %24 : vector<2x32xf32>
    %c0_20 = arith.constant 0 : index
    %c0_21 = arith.constant 0 : index
    %26 = vector.load %arg7[%c0_20, %c0_21] : memref<32x128xf32, #tpu.memory_space<vmem>>, vector<32x128xf32>
    %cst_22 = arith.constant dense<0.000000e+00> : vector<2x128xf32>
    %27 = tpu.matmul %25, %26, %cst_22 {dimension_numbers = #tpu.dot_dimension_numbers<[1], [0], [0], [1], [0, 0, 1, 1], [], []>} : vector<2x32xf32>, vector<32x128xf32>, vector<2x128xf32> -> vector<2x128xf32>
    %c0_23 = arith.constant 0 : index
    %c0_24 = arith.constant 0 : index
    %28 = vector.load %arg8[%c0_23, %c0_24] : memref<1x128xf32, #tpu.memory_space<vmem>>, vector<1x128xf32>
    %29 = vector.broadcast %28 : vector<1x128xf32> to vector<2x128xf32>
    %30 = arith.addf %27, %29 : vector<2x128xf32>
    %c0_25 = arith.constant 0 : index
    %c0_26 = arith.constant 0 : index
    %31 = vector.load %arg9[%c0_25, %c0_26] : memref<2x128xf32, #tpu.memory_space<vmem>>, vector<2x128xf32>
    tpu.vector_store %arg9[%c0_25, %c0_26], %30 {strides = array<i32>} : memref<2x128xf32, #tpu.memory_space<vmem>>, vector<2x128xf32>,
    return
  }
}

</mosaic_0001>

<llo_original>
// kernel: tpu_custom_call.1
$region0: #{tpu_custom_call.1}
  #allocation0 [shape = 'u32[]', space=smem, size = 0x4, offset = 0x4, fixed_abs, tag = 'smem constant byte address 0x4 - core index']
  #allocation1 [shape = 'u32[144,128]{1,0:T(1,128)}', space=vmem, size = 0x12000, scoped, tag = 'internal scratch']
  %s0 = inlined_call_operand.vmem [shape: f32[2,8,1024], index: 0, kind: input, shape index: {}]
  %s1 = inlined_call_operand.vmem [shape: bf16[1024,32], index: 1, kind: input, shape index: {}]
  %s2 = inlined_call_operand.vmem [shape: f32[1,32], index: 2, kind: input, shape index: {}]
  %s3 = inlined_call_operand.vmem [shape: bf16[32,64], index: 3, kind: input, shape index: {}]
  %s4 = inlined_call_operand.vmem [shape: f32[1,64], index: 4, kind: input, shape index: {}]
  %s5 = inlined_call_operand.vmem [shape: bf16[64,32], index: 5, kind: input, shape index: {}]
  %s6 = inlined_call_operand.vmem [shape: f32[1,32], index: 6, kind: input, shape index: {}]
  %s7 = inlined_call_operand.vmem [shape: f32[32,128], index: 7, kind: input, shape index: {}]
  %s8 = inlined_call_operand.vmem [shape: f32[1,128], index: 8, kind: input, shape index: {}]
  %s9 = inlined_call_operand.hbm [shape: f32[2,128], index: 9, kind: output, shape index: {}]
  %s10 = sld [smem:[#allocation0]]
  $region46: #{tpu_custom_call.1} parent=0
    _
  %s12 = ssub.s32 1, %s10
  %s13 = scalar_select 0, %s12, %s10
  $region1: #{tpu_custom_call.1} parent=0
    #allocation2 [shape = 'u8[1024]{0}', space=vmem, size = 0x400, scoped, tag = 'output window, operand 0, single buffered']
    #allocation3 [shape = 's32[1]{0}', space=sflag, size = 0x4, scoped, tag = 'scoped memory for tpu_custom_call.1']
    %14 = vsyncpa [#allocation3], 0
    // Predicated region
    $region2: #{tpu_custom_call.1} parent=1 // pred_check
      _
    $region3: #{tpu_custom_call.1} parent=1 // pred_check_branch
      %16 = sbr.rel (0) target = $region5
    $region4: #{tpu_custom_call.1} parent=1 // pred_region
      _
    $region5: #{tpu_custom_call.1} parent=1 // pred_fallthru
      _
    // Predicated region
    $region6: #{tpu_custom_call.1} parent=1 // pred_check
      _
    $region7: #{tpu_custom_call.1} parent=1 // pred_check_branch
      %18 = sbr.rel (0) target = $region9
    $region8: #{tpu_custom_call.1} parent=1 // pred_region
      _
    $region9: #{tpu_custom_call.1} parent=1 // pred_fallthru
      _
    // Predicated region
    $region10: #{tpu_custom_call.1} parent=1 // pred_check
      _
    $region11: #{tpu_custom_call.1} parent=1 // pred_check_branch
      %20 = sbr.rel (0) target = $region13
    $region12: #{tpu_custom_call.1} parent=1 // pred_region
      _
    $region13: #{tpu_custom_call.1} parent=1 // pred_fallthru
      _
    // Predicated region
    $region14: #{tpu_custom_call.1} parent=1 // pred_check
      _
    $region15: #{tpu_custom_call.1} parent=1 // pred_check_branch
      %22 = sbr.rel (0) target = $region17
    $region16: #{tpu_custom_call.1} parent=1 // pred_region
      _
    $region17: #{tpu_custom_call.1} parent=1 // pred_fallthru
      _
    // Predicated region
    $region18: #{tpu_custom_call.1} parent=1 // pred_check
      _
    $region19: #{tpu_custom_call.1} parent=1 // pred_check_branch
      %24 = sbr.rel (0) target = $region21
    $region20: #{tpu_custom_call.1} parent=1 // pred_region
      _
    $region21: #{tpu_custom_call.1} parent=1 // pred_fallthru
      _
    // Predicated region
    $region22: #{tpu_custom_call.1} parent=1 // pred_check
      _
    $region23: #{tpu_custom_call.1} parent=1 // pred_check_branch
      %26 = sbr.rel (0) target = $region25
    $region24: #{tpu_custom_call.1} parent=1 // pred_region
      _
    $region25: #{tpu_custom_call.1} parent=1 // pred_fallthru
      _
    // Predicated region
    $region26: #{tpu_custom_call.1} parent=1 // pred_check
      _
    $region27: #{tpu_custom_call.1} parent=1 // pred_check_branch
      %28 = sbr.rel (0) target = $region29
    $region28: #{tpu_custom_call.1} parent=1 // pred_region
      _
    $region29: #{tpu_custom_call.1} parent=1 // pred_fallthru
      _
    // Predicated region
    $region30: #{tpu_custom_call.1} parent=1 // pred_check
      _
    $region31: #{tpu_custom_call.1} parent=1 // pred_check_branch
      %30 = sbr.rel (0) target = $region33
    $region32: #{tpu_custom_call.1} parent=1 // pred_region
      _
    $region33: #{tpu_custom_call.1} parent=1 // pred_fallthru
      _
    // Predicated region
    $region34: #{tpu_custom_call.1} parent=1 // pred_check
      _
    $region35: #{tpu_custom_call.1} parent=1 // pred_check_branch
      %32 = sbr.rel (0) target = $region37
    $region36: #{tpu_custom_call.1} parent=1 // pred_region
      _
    $region37: #{tpu_custom_call.1} parent=1 // pred_fallthru
      _
    %v34 = vld [vmem:[%s0] sm:$0xff]
    %v35 = vld [vmem:[%s0 + $0x8] sm:$0xff]
    %v36 = vld [vmem:[%s0 + $0x10] sm:$0xff]
    %v37 = vld [vmem:[%s0 + $0x18] sm:$0xff]
    %v38 = vld [vmem:[%s0 + $0x20] sm:$0xff]
    %v39 = vld [vmem:[%s0 + $0x28] sm:$0xff]
    %v40 = vld [vmem:[%s0 + $0x30] sm:$0xff]
    %v41 = vld [vmem:[%s0 + $0x38] sm:$0xff]
    %v42 = vld [vmem:[%s0 + $0x40] sm:$0xff]
    %v43 = vld [vmem:[%s0 + $0x48] sm:$0xff]
    %v44 = vld [vmem:[%s0 + $0x50] sm:$0xff]
    %v45 = vld [vmem:[%s0 + $0x58] sm:$0xff]
    %v46 = vld [vmem:[%s0 + $0x60] sm:$0xff]
    %v47 = vld [vmem:[%s0 + $0x68] sm:$0xff]
    %v48 = vld [vmem:[%s0 + $0x70] sm:$0xff]
    %v49 = vld [vmem:[%s0 + $0x78] sm:$0xff]
    %v50 = vrot.slane %v34, 4
    %v51 = vadd.f32 %v34, %v50
    %v52 = vrot.slane %v51, 2
    %v53 = vadd.f32 %v51, %v52
    %v54 = vrot.slane %v53, 1
    %v55 = vadd.f32 %v53, %v54
    %v56 = vrot.slane %v35, 4
    %v57 = vadd.f32 %v35, %v56
    %v58 = vrot.slane %v57, 2
    %v59 = vadd.f32 %v57, %v58
    %v60 = vrot.slane %v59, 1
    %v61 = vadd.f32 %v59, %v60
    %v62 = vrot.slane %v36, 4
    %v63 = vadd.f32 %v36, %v62
    %v64 = vrot.slane %v63, 2
    %v65 = vadd.f32 %v63, %v64
    %v66 = vrot.slane %v65, 1
    %v67 = vadd.f32 %v65, %v66
    %v68 = vrot.slane %v37, 4
    %v69 = vadd.f32 %v37, %v68
    %v70 = vrot.slane %v69, 2
    %v71 = vadd.f32 %v69, %v70
    %v72 = vrot.slane %v71, 1
    %v73 = vadd.f32 %v71, %v72
    %v74 = vrot.slane %v38, 4
    %v75 = vadd.f32 %v38, %v74
    %v76 = vrot.slane %v75, 2
    %v77 = vadd.f32 %v75, %v76
    %v78 = vrot.slane %v77, 1
    %v79 = vadd.f32 %v77, %v78
    %v80 = vrot.slane %v39, 4
    %v81 = vadd.f32 %v39, %v80
    %v82 = vrot.slane %v81, 2
    %v83 = vadd.f32 %v81, %v82
    %v84 = vrot.slane %v83, 1
    %v85 = vadd.f32 %v83, %v84
    %v86 = vrot.slane %v40, 4
    %v87 = vadd.f32 %v40, %v86
    %v88 = vrot.slane %v87, 2
    %v89 = vadd.f32 %v87, %v88
    %v90 = vrot.slane %v89, 1
    %v91 = vadd.f32 %v89, %v90
    %v92 = vrot.slane %v41, 4
    %v93 = vadd.f32 %v41, %v92
    %v94 = vrot.slane %v93, 2
    %v95 = vadd.f32 %v93, %v94
    %v96 = vrot.slane %v95, 1
    %v97 = vadd.f32 %v95, %v96
    %v98 = vrot.slane %v42, 4
    %v99 = vadd.f32 %v42, %v98
    %v100 = vrot.slane %v99, 2
    %v101 = vadd.f32 %v99, %v100
    %v102 = vrot.slane %v101, 1
    %v103 = vadd.f32 %v101, %v102
    %v104 = vrot.slane %v43, 4
    %v105 = vadd.f32 %v43, %v104
    %v106 = vrot.slane %v105, 2
    %v107 = vadd.f32 %v105, %v106
    %v108 = vrot.slane %v107, 1
    %v109 = vadd.f32 %v107, %v108
    %v110 = vrot.slane %v44, 4
    %v111 = vadd.f32 %v44, %v110
    %v112 = vrot.slane %v111, 2
    %v113 = vadd.f32 %v111, %v112
    %v114 = vrot.slane %v113, 1
    %v115 = vadd.f32 %v113, %v114
    %v116 = vrot.slane %v45, 4
    %v117 = vadd.f32 %v45, %v116
    %v118 = vrot.slane %v117, 2
    %v119 = vadd.f32 %v117, %v118
    %v120 = vrot.slane %v119, 1
    %v121 = vadd.f32 %v119, %v120
    %v122 = vrot.slane %v46, 4
    %v123 = vadd.f32 %v46, %v122
    %v124 = vrot.slane %v123, 2
    %v125 = vadd.f32 %v123, %v124
    %v126 = vrot.slane %v125, 1
    %v127 = vadd.f32 %v125, %v126
    %v128 = vrot.slane %v47, 4
    %v129 = vadd.f32 %v47, %v128
    %v130 = vrot.slane %v129, 2
    %v131 = vadd.f32 %v129, %v130
    %v132 = vrot.slane %v131, 1
    %v133 = vadd.f32 %v131, %v132
    %v134 = vrot.slane %v48, 4
    %v135 = vadd.f32 %v48, %v134
    %v136 = vrot.slane %v135, 2
    %v137 = vadd.f32 %v135, %v136
    %v138 = vrot.slane %v137, 1
    %v139 = vadd.f32 %v137, %v138
    %v140 = vrot.slane %v49, 4
    %v141 = vadd.f32 %v49, %v140
    %v142 = vrot.slane %v141, 2
    %v143 = vadd.f32 %v141, %v142
    %v144 = vrot.slane %v143, 1
    %v145 = vadd.f32 %v143, %v144
    %v146 = vrcp.pop 8.0
    %v147 = vmul.f32 %v55, %v146
    %v148 = vmul.f32 %v61, %v146
    %v149 = vmul.f32 %v67, %v146
    %v150 = vmul.f32 %v73, %v146
    %v151 = vmul.f32 %v79, %v146
    %v152 = vmul.f32 %v85, %v146
    %v153 = vmul.f32 %v91, %v146
    %v154 = vmul.f32 %v97, %v146
    %v155 = vmul.f32 %v103, %v146
    %v156 = vmul.f32 %v109, %v146
    %v157 = vmul.f32 %v115, %v146
    %v158 = vmul.f32 %v121, %v146
    %v159 = vmul.f32 %v127, %v146
    %v160 = vmul.f32 %v133, %v146
    %v161 = vmul.f32 %v139, %v146
    %v162 = vmul.f32 %v145, %v146
    %v163 = vpack.c.bf16 %v147, %v147
    %v164 = vpack.c.bf16 %v148, %v148
    %v165 = vpack.c.bf16 %v149, %v149
    %v166 = vpack.c.bf16 %v150, %v150
    %v167 = vpack.c.bf16 %v151, %v151
    %v168 = vpack.c.bf16 %v152, %v152
    %v169 = vpack.c.bf16 %v153, %v153
    %v170 = vpack.c.bf16 %v154, %v154
    %v171 = vpack.c.bf16 %v155, %v155
    %v172 = vpack.c.bf16 %v156, %v156
    %v173 = vpack.c.bf16 %v157, %v157
    %v174 = vpack.c.bf16 %v158, %v158
    %v175 = vpack.c.bf16 %v159, %v159
    %v176 = vpack.c.bf16 %v160, %v160
    %v177 = vpack.c.bf16 %v161, %v161
    %v178 = vpack.c.bf16 %v162, %v162
    %v179 = vld [vmem:[%s1] sm:$0xf]
    %v180 = vld [vmem:[%s1 + $0x4] sm:$0xf]
    %v181 = vld [vmem:[%s1 + $0x8] sm:$0xf]
    %v182 = vld [vmem:[%s1 + $0xc] sm:$0xf]
    %v183 = vld [vmem:[%s1 + $0x10] sm:$0xf]
    %v184 = vld [vmem:[%s1 + $0x14] sm:$0xf]
    %v185 = vld [vmem:[%s1 + $0x18] sm:$0xf]
    %v186 = vld [vmem:[%s1 + $0x1c] sm:$0xf]
    %v187 = vld [vmem:[%s1 + $0x20] sm:$0xf]
    %v188 = vld [vmem:[%s1 + $0x24] sm:$0xf]
    %v189 = vld [vmem:[%s1 + $0x28] sm:$0xf]
    %v190 = vld [vmem:[%s1 + $0x2c] sm:$0xf]
    %v191 = vld [vmem:[%s1 + $0x30] sm:$0xf]
    %v192 = vld [vmem:[%s1 + $0x34] sm:$0xf]
    %v193 = vld [vmem:[%s1 + $0x38] sm:$0xf]
    %v194 = vld [vmem:[%s1 + $0x3c] sm:$0xf]
    %v195 = vld [vmem:[%s1 + $0x40] sm:$0xf]
    %v196 = vld [vmem:[%s1 + $0x44] sm:$0xf]
    %v197 = vld [vmem:[%s1 + $0x48] sm:$0xf]
    %v198 = vld [vmem:[%s1 + $0x4c] sm:$0xf]
    %v199 = vld [vmem:[%s1 + $0x50] sm:$0xf]
    %v200 = vld [vmem:[%s1 + $0x54] sm:$0xf]
    %v201 = vld [vmem:[%s1 + $0x58] sm:$0xf]
    %v202 = vld [vmem:[%s1 + $0x5c] sm:$0xf]
    %v203 = vld [vmem:[%s1 + $0x60] sm:$0xf]
    %v204 = vld [vmem:[%s1 + $0x64] sm:$0xf]
    %v205 = vld [vmem:[%s1 + $0x68] sm:$0xf]
    %v206 = vld [vmem:[%s1 + $0x6c] sm:$0xf]
    %v207 = vld [vmem:[%s1 + $0x70] sm:$0xf]
    %v208 = vld [vmem:[%s1 + $0x74] sm:$0xf]
    %v209 = vld [vmem:[%s1 + $0x78] sm:$0xf]
    %v210 = vld [vmem:[%s1 + $0x7c] sm:$0xf]
    %v211 = vld [vmem:[%s1 + $0x80] sm:$0xf]
    %v212 = vld [vmem:[%s1 + $0x84] sm:$0xf]
    %v213 = vld [vmem:[%s1 + $0x88] sm:$0xf]
    %v214 = vld [vmem:[%s1 + $0x8c] sm:$0xf]
    %v215 = vld [vmem:[%s1 + $0x90] sm:$0xf]
    %v216 = vld [vmem:[%s1 + $0x94] sm:$0xf]
    %v217 = vld [vmem:[%s1 + $0x98] sm:$0xf]
    %v218 = vld [vmem:[%s1 + $0x9c] sm:$0xf]
    %v219 = vld [vmem:[%s1 + $0xa0] sm:$0xf]
    %v220 = vld [vmem:[%s1 + $0xa4] sm:$0xf]
    %v221 = vld [vmem:[%s1 + $0xa8] sm:$0xf]
    %v222 = vld [vmem:[%s1 + $0xac] sm:$0xf]
    %v223 = vld [vmem:[%s1 + $0xb0] sm:$0xf]
    %v224 = vld [vmem:[%s1 + $0xb4] sm:$0xf]
    %v225 = vld [vmem:[%s1 + $0xb8] sm:$0xf]
    %v226 = vld [vmem:[%s1 + $0xbc] sm:$0xf]
    %v227 = vld [vmem:[%s1 + $0xc0] sm:$0xf]
    %v228 = vld [vmem:[%s1 + $0xc4] sm:$0xf]
    %v229 = vld [vmem:[%s1 + $0xc8] sm:$0xf]
    %v230 = vld [vmem:[%s1 + $0xcc] sm:$0xf]
    %v231 = vld [vmem:[%s1 + $0xd0] sm:$0xf]
    %v232 = vld [vmem:[%s1 + $0xd4] sm:$0xf]
    %v233 = vld [vmem:[%s1 + $0xd8] sm:$0xf]
    %v234 = vld [vmem:[%s1 + $0xdc] sm:$0xf]
    %v235 = vld [vmem:[%s1 + $0xe0] sm:$0xf]
    %v236 = vld [vmem:[%s1 + $0xe4] sm:$0xf]
    %v237 = vld [vmem:[%s1 + $0xe8] sm:$0xf]
    %v238 = vld [vmem:[%s1 + $0xec] sm:$0xf]
    %v239 = vld [vmem:[%s1 + $0xf0] sm:$0xf]
    %v240 = vld [vmem:[%s1 + $0xf4] sm:$0xf]
    %v241 = vld [vmem:[%s1 + $0xf8] sm:$0xf]
    %v242 = vld [vmem:[%s1 + $0xfc] sm:$0xf]
    %v243 = vld [vmem:[%s1 + $0x100] sm:$0xf]
    %v244 = vld [vmem:[%s1 + $0x104] sm:$0xf]
    %v245 = vld [vmem:[%s1 + $0x108] sm:$0xf]
    %v246 = vld [vmem:[%s1 + $0x10c] sm:$0xf]
    %v247 = vld [vmem:[%s1 + $0x110] sm:$0xf]
    %v248 = vld [vmem:[%s1 + $0x114] sm:$0xf]
    %v249 = vld [vmem:[%s1 + $0x118] sm:$0xf]
    %v250 = vld [vmem:[%s1 + $0x11c] sm:$0xf]
    %v251 = vld [vmem:[%s1 + $0x120] sm:$0xf]
    %v252 = vld [vmem:[%s1 + $0x124] sm:$0xf]
    %v253 = vld [vmem:[%s1 + $0x128] sm:$0xf]
    %v254 = vld [vmem:[%s1 + $0x12c] sm:$0xf]
    %v255 = vld [vmem:[%s1 + $0x130] sm:$0xf]
    %v256 = vld [vmem:[%s1 + $0x134] sm:$0xf]
    %v257 = vld [vmem:[%s1 + $0x138] sm:$0xf]
    %v258 = vld [vmem:[%s1 + $0x13c] sm:$0xf]
    %v259 = vld [vmem:[%s1 + $0x140] sm:$0xf]
    %v260 = vld [vmem:[%s1 + $0x144] sm:$0xf]
    %v261 = vld [vmem:[%s1 + $0x148] sm:$0xf]
    %v262 = vld [vmem:[%s1 + $0x14c] sm:$0xf]
    %v263 = vld [vmem:[%s1 + $0x150] sm:$0xf]
    %v264 = vld [vmem:[%s1 + $0x154] sm:$0xf]
    %v265 = vld [vmem:[%s1 + $0x158] sm:$0xf]
    %v266 = vld [vmem:[%s1 + $0x15c] sm:$0xf]
    %v267 = vld [vmem:[%s1 + $0x160] sm:$0xf]
    %v268 = vld [vmem:[%s1 + $0x164] sm:$0xf]
    %v269 = vld [vmem:[%s1 + $0x168] sm:$0xf]
    %v270 = vld [vmem:[%s1 + $0x16c] sm:$0xf]
    %v271 = vld [vmem:[%s1 + $0x170] sm:$0xf]
    %v272 = vld [vmem:[%s1 + $0x174] sm:$0xf]
    %v273 = vld [vmem:[%s1 + $0x178] sm:$0xf]
    %v274 = vld [vmem:[%s1 + $0x17c] sm:$0xf]
    %v275 = vld [vmem:[%s1 + $0x180] sm:$0xf]
    %v276 = vld [vmem:[%s1 + $0x184] sm:$0xf]
    %v277 = vld [vmem:[%s1 + $0x188] sm:$0xf]
    %v278 = vld [vmem:[%s1 + $0x18c] sm:$0xf]
    %v279 = vld [vmem:[%s1 + $0x190] sm:$0xf]
    %v280 = vld [vmem:[%s1 + $0x194] sm:$0xf]
    %v281 = vld [vmem:[%s1 + $0x198] sm:$0xf]
    %v282 = vld [vmem:[%s1 + $0x19c] sm:$0xf]
    %v283 = vld [vmem:[%s1 + $0x1a0] sm:$0xf]
    %v284 = vld [vmem:[%s1 + $0x1a4] sm:$0xf]
    %v285 = vld [vmem:[%s1 + $0x1a8] sm:$0xf]
    %v286 = vld [vmem:[%s1 + $0x1ac] sm:$0xf]
    %v287 = vld [vmem:[%s1 + $0x1b0] sm:$0xf]
    %v288 = vld [vmem:[%s1 + $0x1b4] sm:$0xf]
    %v289 = vld [vmem:[%s1 + $0x1b8] sm:$0xf]
    %v290 = vld [vmem:[%s1 + $0x1bc] sm:$0xf]
    %v291 = vld [vmem:[%s1 + $0x1c0] sm:$0xf]
    %v292 = vld [vmem:[%s1 + $0x1c4] sm:$0xf]
    %v293 = vld [vmem:[%s1 + $0x1c8] sm:$0xf]
    %v294 = vld [vmem:[%s1 + $0x1cc] sm:$0xf]
    %v295 = vld [vmem:[%s1 + $0x1d0] sm:$0xf]
    %v296 = vld [vmem:[%s1 + $0x1d4] sm:$0xf]
    %v297 = vld [vmem:[%s1 + $0x1d8] sm:$0xf]
    %v298 = vld [vmem:[%s1 + $0x1dc] sm:$0xf]
    %v299 = vld [vmem:[%s1 + $0x1e0] sm:$0xf]
    %v300 = vld [vmem:[%s1 + $0x1e4] sm:$0xf]
    %v301 = vld [vmem:[%s1 + $0x1e8] sm:$0xf]
    %v302 = vld [vmem:[%s1 + $0x1ec] sm:$0xf]
    %v303 = vld [vmem:[%s1 + $0x1f0] sm:$0xf]
    %v304 = vld [vmem:[%s1 + $0x1f4] sm:$0xf]
    %v305 = vld [vmem:[%s1 + $0x1f8] sm:$0xf]
    %v306 = vld [vmem:[%s1 + $0x1fc] sm:$0xf]
    %v307 = vld [vmem:[%s2] sm:$0x1]
    %v309 = vlaneseq
    %v310 = vshrl.u32 %v309, 7
    %v311 = vsub.s32 0, %v310
    %v312 = vrot.slane %v307, %v311
    %v330 = vunpack.c.l.b16 %v163
    %v331 = vunpack.c.l.b16 %v164
    %v332 = vunpack.c.l.b16 %v165
    %v333 = vunpack.c.l.b16 %v166
    %v334 = vunpack.c.l.b16 %v167
    %v335 = vunpack.c.l.b16 %v168
    %v336 = vunpack.c.l.b16 %v169
    %v337 = vunpack.c.l.b16 %v170
    %v338 = vunpack.c.l.b16 %v171
    %v339 = vunpack.c.l.b16 %v172
    %v340 = vunpack.c.l.b16 %v173
    %v341 = vunpack.c.l.b16 %v174
    %v342 = vunpack.c.l.b16 %v175
    %v343 = vunpack.c.l.b16 %v176
    %v344 = vunpack.c.l.b16 %v177
    %v345 = vunpack.c.l.b16 %v178
    %vm346 = vcmask 1041409
    %v347 = vsel %vm346, %v338, %v330
    %v348 = vsel %vm346, %v339, %v331
    %v349 = vsel %vm346, %v340, %v332
    %v350 = vsel %vm346, %v341, %v333
    %v351 = vsel %vm346, %v342, %v334
    %v352 = vsel %vm346, %v343, %v335
    %v353 = vsel %vm346, %v344, %v336
    %v354 = vsel %vm346, %v345, %v337
    %v355 = vpack.c.b16 %v347, %v347
    %v356 = vpack.c.b16 %v348, %v348
    %v357 = vpack.c.b16 %v349, %v349
    %v358 = vpack.c.b16 %v350, %v350
    %v359 = vpack.c.b16 %v351, %v351
    %v360 = vpack.c.b16 %v352, %v352
    %v361 = vpack.c.b16 %v353, %v353
    %v362 = vpack.c.b16 %v354, %v354
    %v499 = vunpack.c.l.b16 %v179
    %v500 = vunpack.c.l.b16 %v180
    %v501 = vunpack.c.l.b16 %v181
    %v502 = vunpack.c.l.b16 %v182
    %v503 = vunpack.c.l.b16 %v183
    %v504 = vunpack.c.l.b16 %v184
    %v505 = vunpack.c.l.b16 %v185
    %v506 = vunpack.c.l.b16 %v186
    %v507 = vunpack.c.l.b16 %v187
    %v508 = vunpack.c.l.b16 %v188
    %v509 = vunpack.c.l.b16 %v189
    %v510 = vunpack.c.l.b16 %v190
    %v511 = vunpack.c.l.b16 %v191
    %v512 = vunpack.c.l.b16 %v192
    %v513 = vunpack.c.l.b16 %v193
    %v514 = vunpack.c.l.b16 %v194
    %v515 = vunpack.c.l.b16 %v195
    %v516 = vunpack.c.l.b16 %v196
    %v517 = vunpack.c.l.b16 %v197
    %v518 = vunpack.c.l.b16 %v198
    %v519 = vunpack.c.l.b16 %v199
    %v520 = vunpack.c.l.b16 %v200
    %v521 = vunpack.c.l.b16 %v201
    %v522 = vunpack.c.l.b16 %v202
    %v523 = vunpack.c.l.b16 %v203
    %v524 = vunpack.c.l.b16 %v204
    %v525 = vunpack.c.l.b16 %v205
    %v526 = vunpack.c.l.b16 %v206
    %v527 = vunpack.c.l.b16 %v207
    %v528 = vunpack.c.l.b16 %v208
    %v529 = vunpack.c.l.b16 %v209
    %v530 = vunpack.c.l.b16 %v210
    %v531 = vunpack.c.l.b16 %v211
    %v532 = vunpack.c.l.b16 %v212
    %v533 = vunpack.c.l.b16 %v213
    %v534 = vunpack.c.l.b16 %v214
    %v535 = vunpack.c.l.b16 %v215
    %v536 = vunpack.c.l.b16 %v216
    %v537 = vunpack.c.l.b16 %v217
    %v538 = vunpack.c.l.b16 %v218
    %v539 = vunpack.c.l.b16 %v219
    %v540 = vunpack.c.l.b16 %v220
    %v541 = vunpack.c.l.b16 %v221
    %v542 = vunpack.c.l.b16 %v222
    %v543 = vunpack.c.l.b16 %v223
    %v544 = vunpack.c.l.b16 %v224
    %v545 = vunpack.c.l.b16 %v225
    %v546 = vunpack.c.l.b16 %v226
    %v547 = vunpack.c.l.b16 %v227
    %v548 = vunpack.c.l.b16 %v228
    %v549 = vunpack.c.l.b16 %v229
    %v550 = vunpack.c.l.b16 %v230
    %v551 = vunpack.c.l.b16 %v231
    %v552 = vunpack.c.l.b16 %v232
    %v553 = vunpack.c.l.b16 %v233
    %v554 = vunpack.c.l.b16 %v234
    %v555 = vunpack.c.l.b16 %v235
    %v556 = vunpack.c.l.b16 %v236
    %v557 = vunpack.c.l.b16 %v237
    %v558 = vunpack.c.l.b16 %v238
    %v559 = vunpack.c.l.b16 %v239
    %v560 = vunpack.c.l.b16 %v240
    %v561 = vunpack.c.l.b16 %v241
    %v562 = vunpack.c.l.b16 %v242
    %v563 = vunpack.c.l.b16 %v243
    %v564 = vunpack.c.l.b16 %v244
    %v565 = vunpack.c.l.b16 %v245
    %v566 = vunpack.c.l.b16 %v246
    %v567 = vunpack.c.l.b16 %v247
    %v568 = vunpack.c.l.b16 %v248
    %v569 = vunpack.c.l.b16 %v249
    %v570 = vunpack.c.l.b16 %v250
    %v571 = vunpack.c.l.b16 %v251
    %v572 = vunpack.c.l.b16 %v252
    %v573 = vunpack.c.l.b16 %v253
    %v574 = vunpack.c.l.b16 %v254
    %v575 = vunpack.c.l.b16 %v255
    %v576 = vunpack.c.l.b16 %v256
    %v577 = vunpack.c.l.b16 %v257
    %v578 = vunpack.c.l.b16 %v258
    %v579 = vunpack.c.l.b16 %v259
    %v580 = vunpack.c.l.b16 %v260
    %v581 = vunpack.c.l.b16 %v261
    %v582 = vunpack.c.l.b16 %v262
    %v583 = vunpack.c.l.b16 %v263
    %v584 = vunpack.c.l.b16 %v264
    %v585 = vunpack.c.l.b16 %v265
    %v586 = vunpack.c.l.b16 %v266
    %v587 = vunpack.c.l.b16 %v267
    %v588 = vunpack.c.l.b16 %v268
    %v589 = vunpack.c.l.b16 %v269
    %v590 = vunpack.c.l.b16 %v270
    %v591 = vunpack.c.l.b16 %v271
    %v592 = vunpack.c.l.b16 %v272
    %v593 = vunpack.c.l.b16 %v273
    %v594 = vunpack.c.l.b16 %v274
    %v595 = vunpack.c.l.b16 %v275
    %v596 = vunpack.c.l.b16 %v276
    %v597 = vunpack.c.l.b16 %v277
    %v598 = vunpack.c.l.b16 %v278
    %v599 = vunpack.c.l.b16 %v279
    %v600 = vunpack.c.l.b16 %v280
    %v601 = vunpack.c.l.b16 %v281
    %v602 = vunpack.c.l.b16 %v282
    %v603 = vunpack.c.l.b16 %v283
    %v604 = vunpack.c.l.b16 %v284
    %v605 = vunpack.c.l.b16 %v285
    %v606 = vunpack.c.l.b16 %v286
    %v607 = vunpack.c.l.b16 %v287
    %v608 = vunpack.c.l.b16 %v288
    %v609 = vunpack.c.l.b16 %v289
    %v610 = vunpack.c.l.b16 %v290
    %v611 = vunpack.c.l.b16 %v291
    %v612 = vunpack.c.l.b16 %v292
    %v613 = vunpack.c.l.b16 %v293
    %v614 = vunpack.c.l.b16 %v294
    %v615 = vunpack.c.l.b16 %v295
    %v616 = vunpack.c.l.b16 %v296
    %v617 = vunpack.c.l.b16 %v297
    %v618 = vunpack.c.l.b16 %v298
    %v619 = vunpack.c.l.b16 %v299
    %v620 = vunpack.c.l.b16 %v300
    %v621 = vunpack.c.l.b16 %v301
    %v622 = vunpack.c.l.b16 %v302
    %v623 = vunpack.c.l.b16 %v303
    %v624 = vunpack.c.l.b16 %v304
    %v625 = vunpack.c.l.b16 %v305
    %v626 = vunpack.c.l.b16 %v306
    %v627 = vpack.c.b16 %v500, %v499
    %v628 = vpack.c.b16 %v502, %v501
    %v629 = vpack.c.b16 %v504, %v503
    %v630 = vpack.c.b16 %v506, %v505
    %v631 = vpack.c.b16 %v508, %v507
    %v632 = vpack.c.b16 %v510, %v509
    %v633 = vpack.c.b16 %v512, %v511
    %v634 = vpack.c.b16 %v514, %v513
    %v635 = vpack.c.b16 %v516, %v515
    %v636 = vpack.c.b16 %v518, %v517
    %v637 = vpack.c.b16 %v520, %v519
    %v638 = vpack.c.b16 %v522, %v521
    %v639 = vpack.c.b16 %v524, %v523
    %v640 = vpack.c.b16 %v526, %v525
    %v641 = vpack.c.b16 %v528, %v527
    %v642 = vpack.c.b16 %v530, %v529
    %v643 = vpack.c.b16 %v532, %v531
    %v644 = vpack.c.b16 %v534, %v533
    %v645 = vpack.c.b16 %v536, %v535
    %v646 = vpack.c.b16 %v538, %v537
    %v647 = vpack.c.b16 %v540, %v539
    %v648 = vpack.c.b16 %v542, %v541
    %v649 = vpack.c.b16 %v544, %v543
    %v650 = vpack.c.b16 %v546, %v545
    %v651 = vpack.c.b16 %v548, %v547
    %v652 = vpack.c.b16 %v550, %v549
    %v653 = vpack.c.b16 %v552, %v551
    %v654 = vpack.c.b16 %v554, %v553
    %v655 = vpack.c.b16 %v556, %v555
    %v656 = vpack.c.b16 %v558, %v557
    %v657 = vpack.c.b16 %v560, %v559
    %v658 = vpack.c.b16 %v562, %v561
    %v659 = vpack.c.b16 %v564, %v563
    %v660 = vpack.c.b16 %v566, %v565
    %v661 = vpack.c.b16 %v568, %v567
    %v662 = vpack.c.b16 %v570, %v569
    %v663 = vpack.c.b16 %v572, %v571
    %v664 = vpack.c.b16 %v574, %v573
    %v665 = vpack.c.b16 %v576, %v575
    %v666 = vpack.c.b16 %v578, %v577
    %v667 = vpack.c.b16 %v580, %v579
    %v668 = vpack.c.b16 %v582, %v581
    %v669 = vpack.c.b16 %v584, %v583
    %v670 = vpack.c.b16 %v586, %v585
    %v671 = vpack.c.b16 %v588, %v587
    %v672 = vpack.c.b16 %v590, %v589
    %v673 = vpack.c.b16 %v592, %v591
    %v674 = vpack.c.b16 %v594, %v593
    %v675 = vpack.c.b16 %v596, %v595
    %v676 = vpack.c.b16 %v598, %v597
    %v677 = vpack.c.b16 %v600, %v599
    %v678 = vpack.c.b16 %v602, %v601
    %v679 = vpack.c.b16 %v604, %v603
    %v680 = vpack.c.b16 %v606, %v605
    %v681 = vpack.c.b16 %v608, %v607
    %v682 = vpack.c.b16 %v610, %v609
    %v683 = vpack.c.b16 %v612, %v611
    %v684 = vpack.c.b16 %v614, %v613
    %v685 = vpack.c.b16 %v616, %v615
    %v686 = vpack.c.b16 %v618, %v617
    %v687 = vpack.c.b16 %v620, %v619
    %v688 = vpack.c.b16 %v622, %v621
    %v689 = vpack.c.b16 %v624, %v623
    %v690 = vpack.c.b16 %v626, %v625
    %755 = vmatprep.subr.bf16.mxu0 0
    %756 = vmatpush1.bf16.msra.mxu0 %v634
    %757 = vmatprep.subr.bf16.mxu0 0
    %758 = vmatpush1.bf16.msra.mxu0 %v633
    %759 = vmatprep.subr.bf16.mxu0 0
    %760 = vmatpush1.bf16.msra.mxu0 %v632
    %761 = vmatprep.subr.bf16.mxu0 0
    %762 = vmatpush1.bf16.msra.mxu0 %v631
    %763 = vmatprep.subr.bf16.mxu0 0
    %764 = vmatpush1.bf16.msra.mxu0 %v630
    %765 = vmatprep.subr.bf16.mxu0 0
    %766 = vmatpush1.bf16.msra.mxu0 %v629
    %767 = vmatprep.subr.bf16.mxu0 0
    %768 = vmatpush1.bf16.msra.mxu0 %v628
    %769 = vmatprep.subr.bf16.mxu0 0
    %770 = vmatpush1.bf16.msra.mxu0 %v627
    %771 = vmatprep.subr.bf16.mxu0 0
    %772 = vmatpush2.bf16.msra.mxu0 %v642
    %773 = vmatprep.subr.bf16.mxu0 0
    %774 = vmatpush2.bf16.msra.mxu0 %v641
    %775 = vmatprep.subr.bf16.mxu0 0
    %776 = vmatpush2.bf16.msra.mxu0 %v640
    %777 = vmatprep.subr.bf16.mxu0 0
    %778 = vmatpush2.bf16.msra.mxu0 %v639
    %779 = vmatprep.subr.bf16.mxu0 0
    %780 = vmatpush2.bf16.msra.mxu0 %v638
    %781 = vmatprep.subr.bf16.mxu0 0
    %782 = vmatpush2.bf16.msra.mxu0 %v637
    %783 = vmatprep.subr.bf16.mxu0 0
    %784 = vmatpush2.bf16.msra.mxu0 %v636
    %785 = vmatprep.subr.bf16.mxu0 0
    %786 = vmatpush2.bf16.msra.mxu0 %v635
    %787 = vmatprep.mubr.bf16.mxu0 %v356
    %788 = vmatmul.mubr.bf16.gmra.mxu0 %v355
    %v789 = vpop.f32.mrf.mxu0
    %v790 = vadd.f32 %v312, %v789
    %v791 = vpop.f32.mrf.mxu0
    %v792 = vpop.f32.mrf.mxu0
    %v793 = vpop.f32.mrf.mxu0
    %794 = vdwg.mxu0
    %795 = vmatprep.subr.bf16.mxu0 0
    %796 = vmatpush1.bf16.msra.mxu0 %v650
    %797 = vmatprep.subr.bf16.mxu0 0
    %798 = vmatpush1.bf16.msra.mxu0 %v649
    %799 = vmatprep.subr.bf16.mxu0 0
    %800 = vmatpush1.bf16.msra.mxu0 %v648
    %801 = vmatprep.subr.bf16.mxu0 0
    %802 = vmatpush1.bf16.msra.mxu0 %v647
    %803 = vmatprep.subr.bf16.mxu0 0
    %804 = vmatpush1.bf16.msra.mxu0 %v646
    %805 = vmatprep.subr.bf16.mxu0 0
    %806 = vmatpush1.bf16.msra.mxu0 %v645
    %807 = vmatprep.subr.bf16.mxu0 0
    %808 = vmatpush1.bf16.msra.mxu0 %v644
    %809 = vmatprep.subr.bf16.mxu0 0
    %810 = vmatpush1.bf16.msra.mxu0 %v643
    %811 = vmatprep.subr.bf16.mxu0 0
    %812 = vmatpush2.bf16.msra.mxu0 %v658
    %813 = vmatprep.subr.bf16.mxu0 0
    %814 = vmatpush2.bf16.msra.mxu0 %v657
    %815 = vmatprep.subr.bf16.mxu0 0
    %816 = vmatpush2.bf16.msra.mxu0 %v656
    %817 = vmatprep.subr.bf16.mxu0 0
    %818 = vmatpush2.bf16.msra.mxu0 %v655
    %819 = vmatprep.subr.bf16.mxu0 0
    %820 = vmatpush2.bf16.msra.mxu0 %v654
    %821 = vmatprep.subr.bf16.mxu0 0
    %822 = vmatpush2.bf16.msra.mxu0 %v653
    %823 = vmatprep.subr.bf16.mxu0 0
    %824 = vmatpush2.bf16.msra.mxu0 %v652
    %825 = vmatprep.subr.bf16.mxu0 0
    %826 = vmatpush2.bf16.msra.mxu0 %v651
    %827 = vmatprep.mubr.bf16.mxu0 %v358
    %828 = vmatmul.mubr.bf16.gmra.mxu0 %v357
    %v829 = vpop.f32.mrf.mxu0
    %v830 = vadd.f32 %v790, %v829
    %v831 = vpop.f32.mrf.mxu0
    %v832 = vpop.f32.mrf.mxu0
    %v833 = vpop.f32.mrf.mxu0
    %834 = vdwg.mxu0
    %835 = vmatprep.subr.bf16.mxu0 0
    %836 = vmatpush1.bf16.msra.mxu0 %v666
    %837 = vmatprep.subr.bf16.mxu0 0
    %838 = vmatpush1.bf16.msra.mxu0 %v665
    %839 = vmatprep.subr.bf16.mxu0 0
    %840 = vmatpush1.bf16.msra.mxu0 %v664
    %841 = vmatprep.subr.bf16.mxu0 0
    %842 = vmatpush1.bf16.msra.mxu0 %v663
    %843 = vmatprep.subr.bf16.mxu0 0
    %844 = vmatpush1.bf16.msra.mxu0 %v662
    %845 = vmatprep.subr.bf16.mxu0 0
    %846 = vmatpush1.bf16.msra.mxu0 %v661
    %847 = vmatprep.subr.bf16.mxu0 0
    %848 = vmatpush1.bf16.msra.mxu0 %v660
    %849 = vmatprep.subr.bf16.mxu0 0
    %850 = vmatpush1.bf16.msra.mxu0 %v659
    %851 = vmatprep.subr.bf16.mxu0 0
    %852 = vmatpush2.bf16.msra.mxu0 %v674
    %853 = vmatprep.subr.bf16.mxu0 0
    %854 = vmatpush2.bf16.msra.mxu0 %v673
    %855 = vmatprep.subr.bf16.mxu0 0
    %856 = vmatpush2.bf16.msra.mxu0 %v672
    %857 = vmatprep.subr.bf16.mxu0 0
    %858 = vmatpush2.bf16.msra.mxu0 %v671
    %859 = vmatprep.subr.bf16.mxu0 0
    %860 = vmatpush2.bf16.msra.mxu0 %v670
    %861 = vmatprep.subr.bf16.mxu0 0
    %862 = vmatpush2.bf16.msra.mxu0 %v669
    %863 = vmatprep.subr.bf16.mxu0 0
    %864 = vmatpush2.bf16.msra.mxu0 %v668
    %865 = vmatprep.subr.bf16.mxu0 0
    %866 = vmatpush2.bf16.msra.mxu0 %v667
    %867 = vmatprep.mubr.bf16.mxu0 %v360
    %868 = vmatmul.mubr.bf16.gmra.mxu0 %v359
    %v869 = vpop.f32.mrf.mxu0
    %v870 = vadd.f32 %v830, %v869
    %v871 = vpop.f32.mrf.mxu0
    %v872 = vpop.f32.mrf.mxu0
    %v873 = vpop.f32.mrf.mxu0
    %874 = vdwg.mxu0
    %875 = vmatprep.subr.bf16.mxu0 0
    %876 = vmatpush1.bf16.msra.mxu0 %v682
    %877 = vmatprep.subr.bf16.mxu0 0
    %878 = vmatpush1.bf16.msra.mxu0 %v681
    %879 = vmatprep.subr.bf16.mxu0 0
    %880 = vmatpush1.bf16.msra.mxu0 %v680
    %881 = vmatprep.subr.bf16.mxu0 0
    %882 = vmatpush1.bf16.msra.mxu0 %v679
    %883 = vmatprep.subr.bf16.mxu0 0
    %884 = vmatpush1.bf16.msra.mxu0 %v678
    %885 = vmatprep.subr.bf16.mxu0 0
    %886 = vmatpush1.bf16.msra.mxu0 %v677
    %887 = vmatprep.subr.bf16.mxu0 0
    %888 = vmatpush1.bf16.msra.mxu0 %v676
    %889 = vmatprep.subr.bf16.mxu0 0
    %890 = vmatpush1.bf16.msra.mxu0 %v675
    %891 = vmatprep.subr.bf16.mxu0 0
    %892 = vmatpush2.bf16.msra.mxu0 %v690
    %893 = vmatprep.subr.bf16.mxu0 0
    %894 = vmatpush2.bf16.msra.mxu0 %v689
    %895 = vmatprep.subr.bf16.mxu0 0
    %896 = vmatpush2.bf16.msra.mxu0 %v688
    %897 = vmatprep.subr.bf16.mxu0 0
    %898 = vmatpush2.bf16.msra.mxu0 %v687
    %899 = vmatprep.subr.bf16.mxu0 0
    %900 = vmatpush2.bf16.msra.mxu0 %v686
    %901 = vmatprep.subr.bf16.mxu0 0
    %902 = vmatpush2.bf16.msra.mxu0 %v685
    %903 = vmatprep.subr.bf16.mxu0 0
    %904 = vmatpush2.bf16.msra.mxu0 %v684
    %905 = vmatprep.subr.bf16.mxu0 0
    %906 = vmatpush2.bf16.msra.mxu0 %v683
    %907 = vmatprep.mubr.bf16.mxu0 %v362
    %908 = vmatmul.mubr.bf16.gmra.mxu0 %v361
    %v909 = vpop.f32.mrf.mxu0
    %v910 = vadd.f32 %v870, %v909
    %v911 = vpop.f32.mrf.mxu0
    %v912 = vpop.f32.mrf.mxu0
    %v913 = vpop.f32.mrf.mxu0
    %914 = vdwg.mxu0
    %v915 = vpack.c.bf16 %v910, %v910
    %v916 = vld [vmem:[%s3] sm:$0xf]
    %v917 = vld [vmem:[%s3 + $0x4] sm:$0xf]
    %v918 = vld [vmem:[%s3 + $0x8] sm:$0xf]
    %v919 = vld [vmem:[%s3 + $0xc] sm:$0xf]
    %v920 = vld [vmem:[%s4] sm:$0x1]
    %v922 = vlaneseq
    %v923 = vshrl.u32 %v922, 7
    %v924 = vsub.s32 0, %v923
    %v925 = vrot.slane %v920, %v924
    %v931 = vunpack.c.l.b16 %v916
    %v932 = vunpack.c.l.b16 %v917
    %v933 = vunpack.c.l.b16 %v918
    %v934 = vunpack.c.l.b16 %v919
    %v935 = vpack.c.b16 %v932, %v931
    %v936 = vpack.c.b16 %v934, %v933
    %vm939 = vcmask 261120
    %v941 = vsel %vm939, %v915, 0
    %943 = vmatprep.subr.bf16.mxu0 0
    %944 = vmatpush1.bf16.msra.mxu0 0
    %945 = vmatprep.subr.bf16.mxu0 0
    %946 = vmatpush1.bf16.msra.mxu0 0
    %947 = vmatprep.subr.bf16.mxu0 0
    %948 = vmatpush1.bf16.msra.mxu0 0
    %949 = vmatprep.subr.bf16.mxu0 0
    %950 = vmatpush1.bf16.msra.mxu0 0
    %951 = vmatprep.subr.bf16.mxu0 0
    %952 = vmatpush1.bf16.msra.mxu0 0
    %953 = vmatprep.subr.bf16.mxu0 0
    %954 = vmatpush1.bf16.msra.mxu0 0
    %955 = vmatprep.subr.bf16.mxu0 0
    %956 = vmatpush1.bf16.msra.mxu0 %v936
    %957 = vmatprep.subr.bf16.mxu0 0
    %958 = vmatpush1.bf16.msra.mxu0 %v935
    %959 = vmatprep.subr.bf16.mxu0 0
    %960 = vmatpush2.bf16.msra.mxu0 0
    %961 = vmatprep.subr.bf16.mxu0 0
    %962 = vmatpush2.bf16.msra.mxu0 0
    %963 = vmatprep.subr.bf16.mxu0 0
    %964 = vmatpush2.bf16.msra.mxu0 0
    %965 = vmatprep.subr.bf16.mxu0 0
    %966 = vmatpush2.bf16.msra.mxu0 0
    %967 = vmatprep.subr.bf16.mxu0 0
    %968 = vmatpush2.bf16.msra.mxu0 0
    %969 = vmatprep.subr.bf16.mxu0 0
    %970 = vmatpush2.bf16.msra.mxu0 0
    %971 = vmatprep.subr.bf16.mxu0 0
    %972 = vmatpush2.bf16.msra.mxu0 0
    %973 = vmatprep.subr.bf16.mxu0 0
    %974 = vmatpush2.bf16.msra.mxu0 0
    %975 = vmatprep.mubr.bf16.mxu0 0
    %976 = vmatmul.mubr.bf16.gmra.mxu0 %v941
    %v977 = vpop.f32.mrf.mxu0
    %v978 = vadd.f32 %v925, %v977
    %v979 = vpop.f32.mrf.mxu0
    %v980 = vpop.f32.mrf.mxu0
    %v981 = vpop.f32.mrf.mxu0
    %982 = vdwg.mxu0
    %v983 = vmax.f32 %v978, 0.0
    %v984 = vpack.c.bf16 %v983, %v983
    %v985 = vld [vmem:[%s5] sm:$0xf]
    %v986 = vld [vmem:[%s5 + $0x4] sm:$0xf]
    %v987 = vld [vmem:[%s5 + $0x8] sm:$0xf]
    %v988 = vld [vmem:[%s5 + $0xc] sm:$0xf]
    %v989 = vld [vmem:[%s5 + $0x10] sm:$0xf]
    %v990 = vld [vmem:[%s5 + $0x14] sm:$0xf]
    %v991 = vld [vmem:[%s5 + $0x18] sm:$0xf]
    %v992 = vld [vmem:[%s5 + $0x1c] sm:$0xf]
    %v993 = vld [vmem:[%s6] sm:$0x1]
    %v995 = vlaneseq
    %v996 = vshrl.u32 %v995, 7
    %v997 = vsub.s32 0, %v996
    %v998 = vrot.slane %v993, %v997
    %v1008 = vunpack.c.l.b16 %v985
    %v1009 = vunpack.c.l.b16 %v986
    %v1010 = vunpack.c.l.b16 %v987
    %v1011 = vunpack.c.l.b16 %v988
    %v1012 = vunpack.c.l.b16 %v989
    %v1013 = vunpack.c.l.b16 %v990
    %v1014 = vunpack.c.l.b16 %v991
    %v1015 = vunpack.c.l.b16 %v992
    %v1016 = vpack.c.b16 %v1009, %v1008
    %v1017 = vpack.c.b16 %v1011, %v1010
    %v1018 = vpack.c.b16 %v1013, %v1012
    %v1019 = vpack.c.b16 %v1015, %v1014
    %vm1024 = vcmask 523264
    %v1026 = vsel %vm1024, %v984, 0
    %1028 = vmatprep.subr.bf16.mxu0 0
    %1029 = vmatpush1.bf16.msra.mxu0 0
    %1030 = vmatprep.subr.bf16.mxu0 0
    %1031 = vmatpush1.bf16.msra.mxu0 0
    %1032 = vmatprep.subr.bf16.mxu0 0
    %1033 = vmatpush1.bf16.msra.mxu0 0
    %1034 = vmatprep.subr.bf16.mxu0 0
    %1035 = vmatpush1.bf16.msra.mxu0 0
    %1036 = vmatprep.subr.bf16.mxu0 0
    %1037 = vmatpush1.bf16.msra.mxu0 %v1019
    %1038 = vmatprep.subr.bf16.mxu0 0
    %1039 = vmatpush1.bf16.msra.mxu0 %v1018
    %1040 = vmatprep.subr.bf16.mxu0 0
    %1041 = vmatpush1.bf16.msra.mxu0 %v1017
    %1042 = vmatprep.subr.bf16.mxu0 0
    %1043 = vmatpush1.bf16.msra.mxu0 %v1016
    %1044 = vmatprep.subr.bf16.mxu0 0
    %1045 = vmatpush2.bf16.msra.mxu0 0
    %1046 = vmatprep.subr.bf16.mxu0 0
    %1047 = vmatpush2.bf16.msra.mxu0 0
    %1048 = vmatprep.subr.bf16.mxu0 0
    %1049 = vmatpush2.bf16.msra.mxu0 0
    %1050 = vmatprep.subr.bf16.mxu0 0
    %1051 = vmatpush2.bf16.msra.mxu0 0
    %1052 = vmatprep.subr.bf16.mxu0 0
    %1053 = vmatpush2.bf16.msra.mxu0 0
    %1054 = vmatprep.subr.bf16.mxu0 0
    %1055 = vmatpush2.bf16.msra.mxu0 0
    %1056 = vmatprep.subr.bf16.mxu0 0
    %1057 = vmatpush2.bf16.msra.mxu0 0
    %1058 = vmatprep.subr.bf16.mxu0 0
    %1059 = vmatpush2.bf16.msra.mxu0 0
    %1060 = vmatprep.mubr.bf16.mxu0 0
    %1061 = vmatmul.mubr.bf16.gmra.mxu0 %v1026
    %v1062 = vpop.f32.mrf.mxu0
    %v1063 = vadd.f32 %v998, %v1062
    %v1064 = vpop.f32.mrf.mxu0
    %v1065 = vpop.f32.mrf.mxu0
    %v1066 = vpop.f32.mrf.mxu0
    %1067 = vdwg.mxu0
    %v1068 = vmax.f32 %v1063, 0.0
    %v1069 = vld [vmem:[%s7] sm:$0xff]
    %v1070 = vld [vmem:[%s7 + $0x8] sm:$0xff]
    %v1071 = vld [vmem:[%s7 + $0x10] sm:$0xff]
    %v1072 = vld [vmem:[%s7 + $0x18] sm:$0xff]
    %v1073 = vld [vmem:[%s8] sm:$0x1]
    %v1075 = vlaneseq
    %v1076 = vshrl.u32 %v1075, 7
    %v1077 = vsub.s32 0, %v1076
    %v1078 = vrot.slane %v1073, %v1077
    %v1081 = vsel %vm939, %v1068, 0
    %1083 = vmatprep.subr.mxu0 0.0
    %1084 = vmatpush1.msra.mxu0 0.0
    %1085 = vmatprep.subr.mxu0 0.0
    %1086 = vmatpush1.msra.mxu0 0.0
    %1087 = vmatprep.subr.mxu0 0.0
    %1088 = vmatpush1.msra.mxu0 0.0
    %1089 = vmatprep.subr.mxu0 0.0
    %1090 = vmatpush1.msra.mxu0 0.0
    %1091 = vmatprep.subr.mxu0 0.0
    %1092 = vmatpush1.msra.mxu0 0.0
    %1093 = vmatprep.subr.mxu0 0.0
    %1094 = vmatpush1.msra.mxu0 0.0
    %1095 = vmatprep.subr.mxu0 0.0
    %1096 = vmatpush1.msra.mxu0 0.0
    %1097 = vmatprep.subr.mxu0 0.0
    %1098 = vmatpush1.msra.mxu0 0.0
    %1099 = vmatprep.subr.mxu0 0.0
    %1100 = vmatpush1.msra.mxu0 0.0
    %1101 = vmatprep.subr.mxu0 0.0
    %1102 = vmatpush1.msra.mxu0 0.0
    %1103 = vmatprep.subr.mxu0 0.0
    %1104 = vmatpush1.msra.mxu0 0.0
    %1105 = vmatprep.subr.mxu0 0.0
    %1106 = vmatpush1.msra.mxu0 0.0
    %1107 = vmatprep.subr.mxu0 0.0
    %1108 = vmatpush1.msra.mxu0 %v1072
    %1109 = vmatprep.subr.mxu0 0.0
    %1110 = vmatpush1.msra.mxu0 %v1071
    %1111 = vmatprep.subr.mxu0 0.0
    %1112 = vmatpush1.msra.mxu0 %v1070
    %1113 = vmatprep.subr.mxu0 0.0
    %1114 = vmatpush1.msra.mxu0 %v1069
    %1115 = vmatprep.subr.mxu0 0.0
    %1116 = vmatpush2.msra.mxu0 0.0
    %1117 = vmatprep.subr.mxu0 0.0
    %1118 = vmatpush2.msra.mxu0 0.0
    %1119 = vmatprep.subr.mxu0 0.0
    %1120 = vmatpush2.msra.mxu0 0.0
    %1121 = vmatprep.subr.mxu0 0.0
    %1122 = vmatpush2.msra.mxu0 0.0
    %1123 = vmatprep.subr.mxu0 0.0
    %1124 = vmatpush2.msra.mxu0 0.0
    %1125 = vmatprep.subr.mxu0 0.0
    %1126 = vmatpush2.msra.mxu0 0.0
    %1127 = vmatprep.subr.mxu0 0.0
    %1128 = vmatpush2.msra.mxu0 0.0
    %1129 = vmatprep.subr.mxu0 0.0
    %1130 = vmatpush2.msra.mxu0 0.0
    %1131 = vmatprep.subr.mxu0 0.0
    %1132 = vmatpush2.msra.mxu0 0.0
    %1133 = vmatprep.subr.mxu0 0.0
    %1134 = vmatpush2.msra.mxu0 0.0
    %1135 = vmatprep.subr.mxu0 0.0
    %1136 = vmatpush2.msra.mxu0 0.0
    %1137 = vmatprep.subr.mxu0 0.0
    %1138 = vmatpush2.msra.mxu0 0.0
    %1139 = vmatprep.subr.mxu0 0.0
    %1140 = vmatpush2.msra.mxu0 0.0
    %1141 = vmatprep.subr.mxu0 0.0
    %1142 = vmatpush2.msra.mxu0 0.0
    %1143 = vmatprep.subr.mxu0 0.0
    %1144 = vmatpush2.msra.mxu0 0.0
    %1145 = vmatprep.subr.mxu0 0.0
    %1146 = vmatpush2.msra.mxu0 0.0
    %1147 = vmatprep.mubr.f32.mxu0 0.0
    %1148 = vmatmul.mubr.f32.gmra.mxu0 %v1081
    %v1149 = vpop.f32.mrf.mxu0
    %v1150 = vadd.f32 %v1078, %v1149
    %v1151 = vpop.f32.mrf.mxu0
    %1152 = vdwg.mxu0
    %1153 = vst [vmem:[#allocation2] sm:$0x3] %v1150
    // Predicated region
    $region38: #{tpu_custom_call.1} parent=1 // pred_check
      _
    $region39: #{tpu_custom_call.1} parent=1 // pred_check_branch
      %1155 = sbr.rel (0) target = $region41
    $region40: #{tpu_custom_call.1} parent=1 // pred_region
      %s1157 = ssub.s32 32, 32
      %1158 = vsyncadd [#allocation3], %s1157
      %s1160 = sshll.u32 [#allocation2], 4
      %s1161 = int_to_ptr.vmem [resolvable:$true] %s1160
      %1163 = dma.vmem_to_hbm [thread:$0]  %s1161, 32, %s9, [#allocation3]
    $region41: #{tpu_custom_call.1} parent=1 // pred_fallthru
      _
    // Predicated region
    $region42: #{tpu_custom_call.1} parent=1 // pred_check
      _
    $region43: #{tpu_custom_call.1} parent=1 // pred_check_branch
      %1165 = sbr.rel (0) target = $region45
    $region44: #{tpu_custom_call.1} parent=1 // pred_region
      %1166 = dma.done [#allocation3], 32
    $region45: #{tpu_custom_call.1} parent=1 // pred_fallthru
      _
    %1167 = vsyncpa [#allocation3], 1

</llo_original>
